<compile_context>
chip_gen: v6e
topology: v6e:2x2x1
jax: 0.10.0
libtpu: 0.0.40
codegen_flags: <defaults>
</compile_context>

<pallas_src>
import functools

import numpy as np
import jax
import jax.numpy as jnp
from jax import lax
from jax.experimental import pallas as pl
from jax.experimental.pallas import tpu as pltpu

_LANE = 128


def _attach_kernel(feats_ref, sl_ref, emb_ref, out_ref, *, no, K, use_bg,
                   compute_dtype):
    """One grid step = (batch image b, lane tile t); all `no` objects attached.

    feats_ref : [1, C, TL]   feature tile of image b (shared by its objects)
    sl_ref    : [1, K, TL]   downsampled soft-label tile of image b
    emb_ref   : [C, 2]       col 0 = object embedding, col 1 = background embedding
    out_ref   : [no, C, TL]  output rows b*no .. b*no + no - 1, lane tile t
    """
    feats = feats_ref[0].astype(compute_dtype)                    # [C, TL]
    eo = emb_ref[:, 0:1].astype(compute_dtype)                    # [C, 1]

    if use_bg:
        eb = emb_ref[:, 1:2].astype(compute_dtype)                # [C, 1]
        sl = sl_ref[0].astype(jnp.float32)                        # [K, TL] (f32 accum)
        # linearity: allbg_o = (sum_j obj_j + bg) - obj_o; one reduction per tile
        total = jnp.sum(sl[1:1 + no], axis=0, keepdims=True) + sl[K - 1:K]  # [1, TL]

    def body(o, carry):
        obj_o = sl_ref[0, pl.ds(1 + o, 1), :]                     # [1, TL]
        val = feats + eo * obj_o.astype(compute_dtype)            # [C, TL]
        if use_bg:
            allbg_o = (total - obj_o.astype(jnp.float32)).astype(compute_dtype)
            val = val + eb * allbg_o
        out_ref[o] = val.astype(out_ref.dtype)                    # per-object store
        return carry

    lax.fori_loop(0, no, body, 0, unroll=True)


def _choose_lane_tile(HW, C, K, no, out_isz, feats_isz, sl_isz):
    """Largest lane tile (multiple of 128) keeping blocks + temps under budget."""
    if HW < _LANE:
        return HW                                   # full (last) dim -> allowed
    max_tl = min(2048, (HW // _LANE) * _LANE)

    def blk_bytes(tl):
        out_blk = no * C * tl * out_isz
        feats_blk = C * tl * feats_isz
        sl_blk = K * tl * sl_isz
        temps = (3 * C + 2 * K) * tl * 4            # compute-dtype/f32 live tiles
        return 2 * (out_blk + feats_blk + sl_blk) + temps   # x2 = double buffering

    budget = 20 << 20                               # leave headroom under 32 MiB scoped
    tl = max_tl
    while tl > _LANE and blk_bytes(tl) > budget:
        tl -= _LANE
    return tl, blk_bytes(tl)


def _static_no(num_objects):
    # Pass a Python int (or numpy array) to avoid a device->host sync here.
    if isinstance(num_objects, (int, np.integer)):
        return int(num_objects)
    return int(np.max(np.asarray(jax.device_get(num_objects))))


def soft_label_attach_pallas(feats_to_attach, soft_labels, embed_obj, embed_bg,
                             stride, num_objects, use_bg_ptt=True):
    no = _static_no(num_objects)
    B, C, H, W = feats_to_attach.shape
    B_, K, Hs, Ws = soft_labels.shape
    assert B == B_, "kernel implements the B == B_ path (feats repeated per object)"
    assert Hs == H * stride and Ws == W * stride
    use_bg = bool(use_bg_ptt) and (embed_bg is not None)
    if use_bg:
        assert K >= no + 2, "need object channels 1..no plus a distinct bg channel"
    else:
        assert K >= no + 1

    HW = H * W
    out_dtype = feats_to_attach.dtype
    # bf16-native VPU on v6e/v7x -> compute in model dtype; f32 models stay f32.
    compute_dtype = jnp.bfloat16 if out_dtype == jnp.bfloat16 else jnp.float32

    # soft_downsample_label: stride x stride mean pool as reshape+reduce glue,
    # kept in f32 until the kernel (no dense pool matrix, no MXU matmul).
    sl_ds = soft_labels.astype(jnp.float32).reshape(B_, K, H, stride, W, stride)
    sl_ds = sl_ds.sum(axis=(3, 5)) / float(stride * stride)

    feats_flat = feats_to_attach.reshape(B, C, HW)
    sl_flat = sl_ds.reshape(B_, K, HW)

    # Fuse both embeddings into a single [C, 2] input (col 0 = obj, col 1 = bg).
    eo = embed_obj.reshape(C)
    eb = embed_bg.reshape(C) if embed_bg is not None else jnp.zeros((C,), out_dtype)
    emb = jnp.stack([eo, eb], axis=1).astype(compute_dtype)        # [C, 2]

    out_isz = jnp.dtype(out_dtype).itemsize
    feats_isz = jnp.dtype(feats_flat.dtype).itemsize
    sl_isz = jnp.dtype(sl_flat.dtype).itemsize
    tl_res = _choose_lane_tile(HW, C, K, no, out_isz, feats_isz, sl_isz)
    if isinstance(tl_res, tuple):
        TL, est_bytes = tl_res
    else:  # HW < 128: single full-dim tile
        TL, est_bytes = tl_res, (2 * (no + 1) * C + 2 * K) * HW * 4
    n_lane_tiles = pl.cdiv(HW, TL)                   # remainder -> masked partial block

    vmem_limit = int(min(64 << 20, max(32 << 20, est_bytes + (4 << 20))))
    bytes_accessed = (B * no * C * HW * out_isz      # output written exactly once
                      + B * C * HW * feats_isz
                      + B * K * HW * sl_isz
                      + C * 2 * jnp.dtype(emb.dtype).itemsize)
    flops = B * no * C * HW * (4 if use_bg else 2)

    kernel = functools.partial(_attach_kernel, no=no, K=K, use_bg=use_bg,
                               compute_dtype=compute_dtype)

    out_flat = pl.pallas_call(
        kernel,
        out_shape=jax.ShapeDtypeStruct((B * no, C, HW), out_dtype),
        grid=(B, n_lane_tiles),
        in_specs=[
            pl.BlockSpec((1, C, TL), lambda b, t: (b, 0, t)),
            pl.BlockSpec((1, K, TL), lambda b, t: (b, 0, t)),
            pl.BlockSpec((C, 2), lambda b, t: (0, 0)),
        ],
        out_specs=pl.BlockSpec((no, C, TL), lambda b, t: (b, 0, t)),
        compiler_params=pltpu.CompilerParams(
            dimension_semantics=("parallel", "parallel"),
            vmem_limit_bytes=vmem_limit),
        cost_estimate=pl.CostEstimate(flops=flops, transcendentals=0,
                                      bytes_accessed=bytes_accessed),
    )(feats_flat, sl_flat, emb)

    return out_flat.reshape(B * no, C, H, W)


def soft_label_attach_reference(feats, soft_labels, embed_obj, embed_bg,
                                stride, num_objects, use_bg_ptt=True):
    """Pure-JAX mirror of the PyTorch forward (use_similarity=False)."""
    no = _static_no(num_objects)
    B, C, H, W = feats.shape
    B_, K, Hs, Ws = soft_labels.shape
    # soft_downsample_label
    sl = soft_labels.reshape(B_, K, H, stride, W, stride)
    sl = jnp.transpose(sl, (0, 1, 2, 4, 3, 5)).reshape(B_, K, H, W, -1)
    sl = jnp.sum(sl, axis=-1) / float(stride ** 2)
    # repeat feats per object
    feats_rep = jnp.broadcast_to(feats[:, None], (B, no, C, H, W)).reshape(-1, C, H, W)
    obj = sl[:, 1:1 + no]                                           # [B, no, H, W]
    ext_obj = (obj[:, :, None] * embed_obj[:, None, :, None, None]).reshape(B_ * no, C, H, W)
    out = feats_rep + ext_obj
    if use_bg_ptt and embed_bg is not None:
        bg = sl[:, -1:]                                             # [B, 1, H, W]
        allbg = jnp.stack(
            [jnp.concatenate([obj[:, np.arange(no) != i], bg], axis=1).sum(axis=1)
             for i in range(no)], axis=1)                           # [B, no, H, W]
        ext_bg = (allbg[:, :, None] * embed_bg[:, None, :, None, None]).reshape(B_ * no, C, H, W)
        out = out + ext_bg
    return out


def _run_case(key, B, C, H, W, stride, K, num_objects, use_bg_ptt):
    k1, k2, k3, k4 = jax.random.split(key, 4)
    feats = jax.random.normal(k1, (B, C, H, W), jnp.float32)
    soft_labels = jax.random.uniform(k2, (B, K, H * stride, W * stride),
                                     dtype=jnp.float32)
    embed_obj = jax.random.normal(k3, (1, C), jnp.float32)
    embed_bg = jax.random.normal(k4, (1, C), jnp.float32)

    out = soft_label_attach_pallas(feats, soft_labels, embed_obj, embed_bg,
                                   stride, num_objects, use_bg_ptt=use_bg_ptt)
    out = jax.block_until_ready(out)
    ref = soft_label_attach_reference(feats, soft_labels, embed_obj, embed_bg,
                                      stride, num_objects, use_bg_ptt=use_bg_ptt)
    np.testing.assert_allclose(np.asarray(out), np.asarray(ref),
                               rtol=1e-2, atol=1e-2)


if __name__ == "__main__":
    key = jax.random.PRNGKey(0)
    k_a, k_b = jax.random.split(key)

    # Case 1: HW multiple of 128 (clean lane tiles), B=2, 3 objects + bg.
    _run_case(k_a, B=2, C=8, H=16, W=16, stride=2, K=5,
              num_objects=np.array([3, 2], dtype=np.int32), use_bg_ptt=True)

    # Case 2: B=1, HW=144 (not a multiple of 128) -> masked partial last lane
    # tile, no padding / no output slice round-trip.
    _run_case(k_b, B=1, C=16, H=12, W=12, stride=2, K=4,
              num_objects=2, use_bg_ptt=True)

    print("KERNEL_OK")
</pallas_src>

<mosaic_0001>
module attributes {stable_mosaic.version = 11 : i64} {
  func.func @_attach_kernel(%arg0: i32, %arg1: i32, %arg2: memref<1x8x256xf32, #tpu.memory_space<vmem>>, %arg3: memref<1x5x256xf32, #tpu.memory_space<vmem>>, %arg4: memref<8x2xf32, #tpu.memory_space<vmem>>, %arg5: memref<3x8x256xf32, #tpu.memory_space<vmem>>) attributes {dimension_semantics = [#tpu.dimension_semantics<parallel>, #tpu.dimension_semantics<parallel>], iteration_bounds = array<i64: 2, 1>, scalar_prefetch = 0 : i64, scratch_operands = 0 : i64, tpu.core_type = #tpu.core_type<tc>, window_params = [{transform_indices = @transform_0, window_bounds = array<i64: 1, 8, 256>}, {transform_indices = @transform_1, window_bounds = array<i64: 1, 5, 256>}, {pipeline_mode = #tpu.pipeline_mode<synchronous>, transform_indices = @transform_2, window_bounds = array<i64: 8, 2>}, {transform_indices = @transform_3, window_bounds = array<i64: 3, 8, 256>}]} {
    %c0 = arith.constant 0 : index
    %c0_0 = arith.constant 0 : index
    %c0_1 = arith.constant 0 : index
    %0 = vector.load %arg2[%c0, %c0_0, %c0_1] : memref<1x8x256xf32, #tpu.memory_space<vmem>>, vector<1x8x256xf32>
    %1 = vector.shape_cast %0 : vector<1x8x256xf32> to vector<8x256xf32>
    %c0_2 = arith.constant 0 : index
    %c0_3 = arith.constant 0 : index
    %2 = vector.load %arg4[%c0_2, %c0_3] : memref<8x2xf32, #tpu.memory_space<vmem>>, vector<8x1xf32>
    %c0_4 = arith.constant 0 : index
    %c1 = arith.constant 1 : index
    %3 = vector.load %arg4[%c0_4, %c1] : memref<8x2xf32, #tpu.memory_space<vmem>>, vector<8x1xf32>
    %c0_5 = arith.constant 0 : index
    %c0_6 = arith.constant 0 : index
    %c0_7 = arith.constant 0 : index
    %4 = vector.load %arg3[%c0_5, %c0_6, %c0_7] : memref<1x5x256xf32, #tpu.memory_space<vmem>>, vector<1x5x256xf32>
    %5 = vector.shape_cast %4 : vector<1x5x256xf32> to vector<5x256xf32>
    %6 = vector.extract_strided_slice %5 {offsets = [1, 0], sizes = [3, 256], strides = [1, 1]} : vector<5x256xf32> to vector<3x256xf32>
    %cst = arith.constant dense<0.000000e+00> : vector<256xf32>
    %7 = vector.multi_reduction <add>, %6, %cst [0] : vector<3x256xf32> to vector<256xf32>
    %8 = vector.shape_cast %7 : vector<256xf32> to vector<1x256xf32>
    %9 = vector.extract_strided_slice %5 {offsets = [4, 0], sizes = [1, 256], strides = [1, 1]} : vector<5x256xf32> to vector<1x256xf32>
    %10 = arith.addf %8, %9 : vector<1x256xf32>
    %c0_i32 = arith.constant 0 : i32
    %c1_i32 = arith.constant 1 : i32
    %11 = arith.addi %c1_i32, %c0_i32 : i32
    %c0_8 = arith.constant 0 : index
    %12 = arith.index_cast %11 : i32 to index
    %c0_9 = arith.constant 0 : index
    %13 = vector.load %arg3[%c0_8, %12, %c0_9] : memref<1x5x256xf32, #tpu.memory_space<vmem>>, vector<1x1x256xf32>
    %14 = vector.shape_cast %13 : vector<1x1x256xf32> to vector<1x256xf32>
    %15 = vector.broadcast %2 : vector<8x1xf32> to vector<8x256xf32>
    %16 = vector.broadcast %14 : vector<1x256xf32> to vector<8x256xf32>
    %17 = arith.mulf %15, %16 : vector<8x256xf32>
    %18 = arith.addf %1, %17 : vector<8x256xf32>
    %19 = arith.subf %10, %14 : vector<1x256xf32>
    %20 = vector.broadcast %3 : vector<8x1xf32> to vector<8x256xf32>
    %21 = vector.broadcast %19 : vector<1x256xf32> to vector<8x256xf32>
    %22 = arith.mulf %20, %21 : vector<8x256xf32>
    %23 = arith.addf %18, %22 : vector<8x256xf32>
    %24 = arith.index_cast %c0_i32 : i32 to index
    %c0_10 = arith.constant 0 : index
    %c0_11 = arith.constant 0 : index
    %25 = vector.load %arg5[%24, %c0_10, %c0_11] : memref<3x8x256xf32, #tpu.memory_space<vmem>>, vector<1x8x256xf32>
    %26 = vector.shape_cast %25 : vector<1x8x256xf32> to vector<8x256xf32>
    %27 = vector.shape_cast %23 : vector<8x256xf32> to vector<1x8x256xf32>
    tpu.vector_store %arg5[%24, %c0_10, %c0_11], %27 {strides = array<i32>} : memref<3x8x256xf32, #tpu.memory_space<vmem>>, vector<1x8x256xf32>,
    %c1_i32_12 = arith.constant 1 : i32
    %c1_i32_13 = arith.constant 1 : i32
    %28 = arith.addi %c1_i32_13, %c1_i32_12 : i32
    %c0_14 = arith.constant 0 : index
    %29 = arith.index_cast %28 : i32 to index
    %c0_15 = arith.constant 0 : index
    %30 = vector.load %arg3[%c0_14, %29, %c0_15] : memref<1x5x256xf32, #tpu.memory_space<vmem>>, vector<1x1x256xf32>
    %31 = vector.shape_cast %30 : vector<1x1x256xf32> to vector<1x256xf32>
    %32 = vector.broadcast %2 : vector<8x1xf32> to vector<8x256xf32>
    %33 = vector.broadcast %31 : vector<1x256xf32> to vector<8x256xf32>
    %34 = arith.mulf %32, %33 : vector<8x256xf32>
    %35 = arith.addf %1, %34 : vector<8x256xf32>
    %36 = arith.subf %10, %31 : vector<1x256xf32>
    %37 = vector.broadcast %3 : vector<8x1xf32> to vector<8x256xf32>
    %38 = vector.broadcast %36 : vector<1x256xf32> to vector<8x256xf32>
    %39 = arith.mulf %37, %38 : vector<8x256xf32>
    %40 = arith.addf %35, %39 : vector<8x256xf32>
    %41 = arith.index_cast %c1_i32_12 : i32 to index
    %c0_16 = arith.constant 0 : index
    %c0_17 = arith.constant 0 : index
    %42 = vector.load %arg5[%41, %c0_16, %c0_17] : memref<3x8x256xf32, #tpu.memory_space<vmem>>, vector<1x8x256xf32>
    %43 = vector.shape_cast %42 : vector<1x8x256xf32> to vector<8x256xf32>
    %44 = vector.shape_cast %40 : vector<8x256xf32> to vector<1x8x256xf32>
    tpu.vector_store %arg5[%41, %c0_16, %c0_17], %44 {strides = array<i32>} : memref<3x8x256xf32, #tpu.memory_space<vmem>>, vector<1x8x256xf32>,
    %c2_i32 = arith.constant 2 : i32
    %c1_i32_18 = arith.constant 1 : i32
    %45 = arith.addi %c1_i32_18, %c2_i32 : i32
    %c0_19 = arith.constant 0 : index
    %46 = arith.index_cast %45 : i32 to index
    %c0_20 = arith.constant 0 : index
    %47 = vector.load %arg3[%c0_19, %46, %c0_20] : memref<1x5x256xf32, #tpu.memory_space<vmem>>, vector<1x1x256xf32>
    %48 = vector.shape_cast %47 : vector<1x1x256xf32> to vector<1x256xf32>
    %49 = vector.broadcast %2 : vector<8x1xf32> to vector<8x256xf32>
    %50 = vector.broadcast %48 : vector<1x256xf32> to vector<8x256xf32>
    %51 = arith.mulf %49, %50 : vector<8x256xf32>
    %52 = arith.addf %1, %51 : vector<8x256xf32>
    %53 = arith.subf %10, %48 : vector<1x256xf32>
    %54 = vector.broadcast %3 : vector<8x1xf32> to vector<8x256xf32>
    %55 = vector.broadcast %53 : vector<1x256xf32> to vector<8x256xf32>
    %56 = arith.mulf %54, %55 : vector<8x256xf32>
    %57 = arith.addf %52, %56 : vector<8x256xf32>
    %58 = arith.index_cast %c2_i32 : i32 to index
    %c0_21 = arith.constant 0 : index
    %c0_22 = arith.constant 0 : index
    %59 = vector.load %arg5[%58, %c0_21, %c0_22] : memref<3x8x256xf32, #tpu.memory_space<vmem>>, vector<1x8x256xf32>
    %60 = vector.shape_cast %59 : vector<1x8x256xf32> to vector<8x256xf32>
    %61 = vector.shape_cast %57 : vector<8x256xf32> to vector<1x8x256xf32>
    tpu.vector_store %arg5[%58, %c0_21, %c0_22], %61 {strides = array<i32>} : memref<3x8x256xf32, #tpu.memory_space<vmem>>, vector<1x8x256xf32>,
    %c3_i32 = arith.constant 3 : i32
    return
  }
  func.func @transform_0(%arg0: i32, %arg1: i32) -> (i32, i32, i32) {
    %c0_i32 = arith.constant 0 : i32
    %c0_i32_0 = arith.constant 0 : i32
    return %arg0, %c0_i32, %arg1 : i32, i32, i32
  }
  func.func @transform_1(%arg0: i32, %arg1: i32) -> (i32, i32, i32) {
    %c0_i32 = arith.constant 0 : i32
    %c0_i32_0 = arith.constant 0 : i32
    return %arg0, %c0_i32, %arg1 : i32, i32, i32
  }
  func.func @transform_2(%arg0: i32, %arg1: i32) -> (i32, i32) {
    %c0_i32 = arith.constant 0 : i32
    %c0_i32_0 = arith.constant 0 : i32
    %c0_i32_1 = arith.constant 0 : i32
    return %c0_i32, %c0_i32_0 : i32, i32
  }
  func.func @transform_3(%arg0: i32, %arg1: i32) -> (i32, i32, i32) {
    %c0_i32 = arith.constant 0 : i32
    %c0_i32_0 = arith.constant 0 : i32
    return %arg0, %c0_i32, %arg1 : i32, i32, i32
  }
}

</mosaic_0001>

<llo_original>
// kernel: tpu_custom_call.1
$region0: #{tpu_custom_call.1}
  #allocation0 [shape = 'u32[]', space=smem, size = 0x4, offset = 0x4, fixed_abs, tag = 'smem constant byte address 0x4 - core index']
  #allocation1 [shape = 'u32[144,128]{1,0:T(1,128)}', space=vmem, size = 0x12000, scoped, tag = 'internal scratch']
  %s0 = inlined_call_operand.vmem [shape: f32[2,8,256], index: 0, kind: input, shape index: {}]
  %s1 = inlined_call_operand.vmem [shape: f32[2,5,256], index: 1, kind: input, shape index: {}]
  %s2 = inlined_call_operand.vmem [shape: f32[8,2], index: 2, kind: input, shape index: {}]
  %s3 = inlined_call_operand.hbm [shape: f32[6,8,256], index: 3, kind: output, shape index: {}]
  %s4 = sld [smem:[#allocation0]]
  $region45: #{tpu_custom_call.1} parent=0
    _
  %s6 = ssub.s32 1, %s4
  %s7 = scalar_select 0, %s6, %s4
  $region1: #{tpu_custom_call.1} parent=0
    #allocation2 [shape = 'u8[49152]{0}', space=vmem, size = 0xc000, scoped, tag = 'output window, operand 0']
    #allocation3 [shape = 's32[2]{0}', space=sflag, size = 0x8, scoped, tag = 'scoped memory for tpu_custom_call.1']
    %8 = vsyncpa [#allocation3], 0
    %s9 = scalar_lea.sflag [#allocation3], 1
    %10 = vsyncpa %s9, 0
    loop: start=0, step=1, limit=4
    $region2: #{tpu_custom_call.1} parent=1 // loop_pre_header
      _
    $region3: #{tpu_custom_call.1} parent=1 // loop_header
      %s12 = sphi 0, %s16
      %p13 = scmp.ge.s32.totalorder %s12, 4
      %s19 = sphi 0, %s31
      %s20 = sphi 0, %s27
      %s21 = sphi 0, %s19
      %s22 = sphi 0, %s20
      %s23 = sphi 0, %s21
      %s24 = sphi 0, %s22
      %s36 = sphi 0, %s38
      %s39 = sphi 0, %s36
      %s40 = sphi 0, %s39
      %s56 = sphi 0, %s40
      %s64 = sphi 0, %s66
      %s67 = sphi 0, %s64
      %s68 = sphi 0, %s67
      %s84 = sphi 0, %s68
      %s88 = sphi 0, %s88
      %s90 = sphi 0, %s88
      %s91 = sphi 0, %s90
      %s105 = sphi 0, %s91
      %s113 = sphi 0, %s115
      %s116 = sphi 0, %s113
      %s117 = sphi 0, %s116
      %s133 = sphi 0, %s117
    $region4: #{tpu_custom_call.1} parent=1 // loop_header_branch
      %15 = sbr.rel (%p13) target = $region8
    $region5: #{tpu_custom_call.1} parent=1 // loop_body
      %s17 = ssub.s32 %s12, 1
      %s18 = ssub.s32 %s12, 2
      %s25 = sadd.s32 1, %s20
      %p26 = scmp.ge.s32.totalorder %s25, 1
      %s27 = scalar_select %p26, 0, %s25
      %s28 = sadd.s32 1, %s19
      %s29 = scalar_select %p26, %s28, %s19
      %p30 = scmp.ge.s32.totalorder %s29, 2
      %s31 = scalar_select %p30, 0, %s29
      %s32 = ssub.s32 %s19, %s31
      %s33 = ssub.s32 %s20, %s27
      %s34 = sor.u32 %s32, %s33
      %p35 = scmp.eq.s32.totalorder %s34, 0
      %s37 = sadd.s32 %s36, 1
      %s38 = scalar_select %p35, %s36, %s37
      %p41 = pneg %p35
      %p42 = scmp.eq.s32.totalorder %s12, 1
      %p43 = por %p41, %p42
      %p44 = scmp.ne.s32.totalorder %s36, %s39
      %p45 = scmp.eq.s32.totalorder %s12, 0
      %p46 = por %p44, %p45
      %p47 = scmp.ne.s32.totalorder %s36, %s39
      %p48 = scmp.eq.s32.totalorder %s17, 1
      %p49 = por %p47, %p48
      %p50 = scmp.ne.s32.totalorder %s39, %s40
      %p51 = scmp.eq.s32.totalorder %s17, 0
      %p52 = por %p50, %p51
      %p53 = scmp.ne.s32.totalorder %s39, %s40
      %p54 = scmp.eq.s32.totalorder %s18, 1
      %p55 = por %p53, %p54
      %p57 = scmp.ne.s32.totalorder %s40, %s56
      %p58 = scmp.eq.s32.totalorder %s18, 0
      %p59 = por %p57, %p58
      %s60 = ssub.s32 %s19, %s31
      %s61 = ssub.s32 %s20, %s27
      %s62 = sor.u32 %s60, %s61
      %p63 = scmp.eq.s32.totalorder %s62, 0
      %s65 = sadd.s32 %s64, 1
      %s66 = scalar_select %p63, %s64, %s65
      %p69 = pneg %p63
      %p70 = scmp.eq.s32.totalorder %s12, 1
      %p71 = por %p69, %p70
      %p72 = scmp.ne.s32.totalorder %s64, %s67
      %p73 = scmp.eq.s32.totalorder %s12, 0
      %p74 = por %p72, %p73
      %p75 = scmp.ne.s32.totalorder %s64, %s67
      %p76 = scmp.eq.s32.totalorder %s17, 1
      %p77 = por %p75, %p76
      %p78 = scmp.ne.s32.totalorder %s67, %s68
      %p79 = scmp.eq.s32.totalorder %s17, 0
      %p80 = por %p78, %p79
      %p81 = scmp.ne.s32.totalorder %s67, %s68
      %p82 = scmp.eq.s32.totalorder %s18, 1
      %p83 = por %p81, %p82
      %p85 = scmp.ne.s32.totalorder %s68, %s84
      %p86 = scmp.eq.s32.totalorder %s18, 0
      %p87 = por %p85, %p86
      %s89 = sadd.s32 %s88, 1
      %p92 = scmp.eq.s32.totalorder %s12, 1
      %p93 = scmp.ne.s32.totalorder %s88, %s90
      %p94 = scmp.eq.s32.totalorder %s12, 0
      %p95 = por %p93, %p94
      %p96 = scmp.ne.s32.totalorder %s88, %s90
      %p97 = scmp.eq.s32.totalorder %s17, 1
      %p98 = por %p96, %p97
      %p99 = scmp.ne.s32.totalorder %s90, %s91
      %p100 = scmp.eq.s32.totalorder %s17, 0
      %p101 = por %p99, %p100
      %p102 = scmp.ne.s32.totalorder %s90, %s91
      %p103 = scmp.eq.s32.totalorder %s18, 1
      %p104 = por %p102, %p103
      %p106 = scmp.ne.s32.totalorder %s91, %s105
      %p107 = scmp.eq.s32.totalorder %s18, 0
      %p108 = por %p106, %p107
      %s109 = ssub.s32 %s19, %s31
      %s110 = ssub.s32 %s20, %s27
      %s111 = sor.u32 %s109, %s110
      %p112 = scmp.eq.s32.totalorder %s111, 0
      %s114 = sadd.s32 %s113, 1
      %s115 = scalar_select %p112, %s113, %s114
      %p118 = pneg %p112
      %p119 = scmp.eq.s32.totalorder %s12, 1
      %p120 = por %p118, %p119
      %p121 = scmp.ne.s32.totalorder %s113, %s116
      %p122 = scmp.eq.s32.totalorder %s12, 0
      %p123 = por %p121, %p122
      %p124 = scmp.ne.s32.totalorder %s113, %s116
      %p125 = scmp.eq.s32.totalorder %s17, 1
      %p126 = por %p124, %p125
      %p127 = scmp.ne.s32.totalorder %s116, %s117
      %p128 = scmp.eq.s32.totalorder %s17, 0
      %p129 = por %p127, %p128
      %p130 = scmp.ne.s32.totalorder %s116, %s117
      %p131 = scmp.eq.s32.totalorder %s18, 1
      %p132 = por %p130, %p131
      %p134 = scmp.ne.s32.totalorder %s117, %s133
      %p135 = scmp.eq.s32.totalorder %s18, 0
      %p136 = por %p134, %p135
      %p137 = scmp.le.s32.totalorder 1, %s12
      %p138 = scmp.lt.s32.totalorder %s12, 3
      %p139 = pnand %p137, %p138
      %p140 = pneg %p139
      // Predicated region
      $region9: #{tpu_custom_call.1} parent=5 // pred_check
        _
      $region10: #{tpu_custom_call.1} parent=5 // pred_check_branch
        %142 = sbr.rel (%p139) target = $region12
      $region11: #{tpu_custom_call.1} parent=5 // pred_region
        %s143 = ssub.s32 %s12, 1
        // Predicated region
        $region13: #{tpu_custom_call.1} parent=11 // pred_check
          %p144 = pneg %p101
        $region14: #{tpu_custom_call.1} parent=11 // pred_check_branch
          %146 = sbr.rel (%p144) target = $region16
        $region15: #{tpu_custom_call.1} parent=11 // pred_region
          _
        $region16: #{tpu_custom_call.1} parent=11 // pred_fallthru
          _
      $region12: #{tpu_custom_call.1} parent=5 // pred_fallthru
        _
      %p147 = scmp.lt.s32.totalorder %s12, 2
      // Predicated region
      $region17: #{tpu_custom_call.1} parent=5 // pred_check
        %p148 = pneg %p147
      $region18: #{tpu_custom_call.1} parent=5 // pred_check_branch
        %150 = sbr.rel (%p148) target = $region20
      $region19: #{tpu_custom_call.1} parent=5 // pred_region
        // Predicated region
        $region21: #{tpu_custom_call.1} parent=19 // pred_check
          %p151 = pneg %p46
        $region22: #{tpu_custom_call.1} parent=19 // pred_check_branch
          %153 = sbr.rel (%p151) target = $region24
        $region23: #{tpu_custom_call.1} parent=19 // pred_region
          %s154 = smul.u32 2, %s20
          %p155 = scmp.lt.s32.totalorder %s19, 1
          %s156 = scalar_select %p155, %s19, 1
          %p157 = scmp.lt.s32.totalorder %s154, 1
          %s158 = scalar_select %p157, %s154, 1
          %s159 = smul.addr %s156, 2
          %s160 = sadd.s32 %s158, %s159
          %s161 = smul.addr %s160, 8
          %s162 = scalar_lea.vmem %s0, %s161
          %s163 = smul.u32 2, %s20
        $region24: #{tpu_custom_call.1} parent=19 // pred_fallthru
          _
        // Predicated region
        $region25: #{tpu_custom_call.1} parent=19 // pred_check
          %p164 = pneg %p74
        $region26: #{tpu_custom_call.1} parent=19 // pred_check_branch
          %166 = sbr.rel (%p164) target = $region28
        $region27: #{tpu_custom_call.1} parent=19 // pred_region
          %s167 = smul.u32 2, %s20
          %p168 = scmp.lt.s32.totalorder %s19, 1
          %s169 = scalar_select %p168, %s19, 1
          %p170 = scmp.lt.s32.totalorder %s167, 1
          %s171 = scalar_select %p170, %s167, 1
          %s172 = smul.addr %s169, 2
          %s173 = sadd.s32 %s171, %s172
          %s174 = smul.addr %s173, 8
          %s175 = scalar_lea.vmem %s1, %s174
          %s176 = smul.u32 2, %s20
        $region28: #{tpu_custom_call.1} parent=19 // pred_fallthru
          _
      $region20: #{tpu_custom_call.1} parent=5 // pred_fallthru
        _
      %p177 = scmp.le.s32.totalorder 1, %s12
      %p178 = scmp.lt.s32.totalorder %s12, 3
      %p179 = pnand %p177, %p178
      %p180 = pneg %p179
      // Predicated region
      $region29: #{tpu_custom_call.1} parent=5 // pred_check
        _
      $region30: #{tpu_custom_call.1} parent=5 // pred_check_branch
        %182 = sbr.rel (%p179) target = $region32
      $region31: #{tpu_custom_call.1} parent=5 // pred_region
        %s183 = ssub.s32 %s12, 1
        %s184 = smul.u32 2, %s22
        %p185 = scmp.lt.s32.totalorder %s21, 1
        %s186 = scalar_select %p185, %s21, 1
        %p187 = scmp.lt.s32.totalorder %s184, 1
        %s188 = scalar_select %p187, %s184, 1
        %s189 = smul.addr %s186, 2
        %s190 = sadd.s32 %s188, %s189
        %s191 = smul.addr %s190, 8
        %s192 = scalar_lea.vmem %s0, %s191
        %p193 = pneg %p52
        %p194 = pneg %p49
        %s195 = smul.u32 2, %s22
        %p196 = scmp.lt.s32.totalorder %s21, 1
        %s197 = scalar_select %p196, %s21, 1
        %p198 = scmp.lt.s32.totalorder %s195, 1
        %s199 = scalar_select %p198, %s195, 1
        %s200 = smul.addr %s197, 2
        %s201 = sadd.s32 %s199, %s200
        %s202 = smul.addr %s201, 8
        %s203 = scalar_lea.vmem %s1, %s202
        %p204 = pneg %p80
        %p205 = pneg %p77
        %p206 = pneg %p101
        %p207 = pneg %p98
        %p208 = pneg %p129
        %p209 = pneg %p126
        %s210 = sand.u32 %s116, 1
        %s211 = scalar_lea.sflag [#allocation3], %s210
        %s212 = sand.u32 %s116, 1
        %s213 = smul.addr %s212, 48
        %s214 = scalar_lea.vmem [#allocation2], %s213
        %s215 = smul.u32 2, %s22
        %p216 = scmp.lt.s32.totalorder %s21, 1
        %s217 = scalar_select %p216, %s21, 1
        %p218 = scmp.lt.s32.totalorder %s215, 1
        %s219 = scalar_select %p218, %s215, 1
        %s220 = smul.addr %s217, 2
        %s221 = sadd.s32 %s219, %s220
        %s222 = smul.addr %s221, 8
        %s223 = scalar_lea.vmem %s0, %s222
        %s224 = smul.u32 2, %s22
        %s225 = smul.u32 2, %s22
        %p226 = scmp.lt.s32.totalorder %s21, 1
        %s227 = scalar_select %p226, %s21, 1
        %p228 = scmp.lt.s32.totalorder %s225, 1
        %s229 = scalar_select %p228, %s225, 1
        %s230 = smul.addr %s227, 2
        %s231 = sadd.s32 %s229, %s230
        %s232 = smul.addr %s231, 8
        %s233 = scalar_lea.vmem %s1, %s232
        %s234 = smul.u32 2, %s22
        %s235 = smul.u32 3, %s21
        %s236 = smul.u32 2, %s22
        %v237 = vld [vmem:[%s223] sm:$0xff]
        %v238 = vld [vmem:[%s223 + $0x8] sm:$0xff]
        %v239 = vld [vmem:[%s2] sm:$0xff]
        %v240 = vld [vmem:[%s233] sm:$0x1f]
        %v241 = vld [vmem:[%s233 + $0x8] sm:$0x1f]
        %v244 = vrot.slane %v240, 1
        %v245 = vrot.slane %v241, 1
        %vm248 = vcmask 1042432
        %v249 = vsel %vm248, %v244, 0.0
        %v250 = vrot.slane %v249, 4
        %v251 = vadd.f32 %v249, %v250
        %v252 = vrot.slane %v251, 2
        %v253 = vadd.f32 %v251, %v252
        %v254 = vrot.slane %v253, 1
        %v255 = vadd.f32 %v253, %v254
        %v256 = vsel %vm248, %v245, 0.0
        %v257 = vrot.slane %v256, 4
        %v258 = vadd.f32 %v256, %v257
        %v259 = vrot.slane %v258, 2
        %v260 = vadd.f32 %v258, %v259
        %v261 = vrot.slane %v260, 1
        %v262 = vadd.f32 %v260, %v261
        %v263 = vadd.f32 %v255, %v240
        %v264 = vadd.f32 %v262, %v241
        %s265 = scalar_lea.vmem %s233, 1
        %v266 = vld [vmem:[%s265] ss:$8 sm:$0x3]
        %268 = vset.pattern.permute.xlu0 0
        %269 = vperm.xlu0 %268, %v239
        %v270 = vpop.permute.xlu0 %269
        %v273 = vlaneseq
        %v274 = vshrl.u32 %v273, 7
        %v275 = vsub.s32 0, %v274
        %v276 = vrot.slane %v266, %v275
        %v277 = vlaneseq
        %v278 = vshrl.u32 %v277, 7
        %v279 = vsub.s32 1, %v278
        %v280 = vrot.slane %v266, %v279
        %v283 = vmul.f32 %v270, %v276
        %v284 = vmul.f32 %v270, %v280
        %v285 = vadd.f32 %v237, %v283
        %v286 = vadd.f32 %v238, %v284
        %v287 = vsub.f32 %v263, %v276
        %v288 = vsub.f32 %v264, %v280
        %289 = vset.pattern.permute.xlu0 1
        %290 = vperm.xlu0 %289, %v239
        %v291 = vpop.permute.xlu0 %290
        %v293 = vlaneseq
        %v294 = vshrl.u32 %v293, 7
        %v295 = vsub.s32 4, %v294
        %v296 = vrot.slane %v287, %v295
        %v297 = vlaneseq
        %v298 = vshrl.u32 %v297, 7
        %v299 = vsub.s32 4, %v298
        %v300 = vrot.slane %v288, %v299
        %v301 = vmul.f32 %v291, %v296
        %v302 = vmul.f32 %v291, %v300
        %v303 = vadd.f32 %v285, %v301
        %v304 = vadd.f32 %v286, %v302
        %305 = vst [vmem:[%s214] sm:$0xff] %v303
        %306 = vst [vmem:[%s214 + $0x8] sm:$0xff] %v304
        %s307 = scalar_lea.vmem %s233, 2
        %v308 = vld [vmem:[%s307] ss:$8 sm:$0x3]
        %v310 = vlaneseq
        %v311 = vshrl.u32 %v310, 7
        %v312 = vsub.s32 0, %v311
        %v313 = vrot.slane %v308, %v312
        %v314 = vlaneseq
        %v315 = vshrl.u32 %v314, 7
        %v316 = vsub.s32 1, %v315
        %v317 = vrot.slane %v308, %v316
        %v320 = vmul.f32 %v270, %v313
        %v321 = vmul.f32 %v270, %v317
        %v322 = vadd.f32 %v237, %v320
        %v323 = vadd.f32 %v238, %v321
        %v324 = vsub.f32 %v263, %v313
        %v325 = vsub.f32 %v264, %v317
        %v326 = vlaneseq
        %v327 = vshrl.u32 %v326, 7
        %v328 = vsub.s32 4, %v327
        %v329 = vrot.slane %v324, %v328
        %v330 = vlaneseq
        %v331 = vshrl.u32 %v330, 7
        %v332 = vsub.s32 4, %v331
        %v333 = vrot.slane %v325, %v332
        %v334 = vmul.f32 %v291, %v329
        %v335 = vmul.f32 %v291, %v333
        %v336 = vadd.f32 %v322, %v334
        %v337 = vadd.f32 %v323, %v335
        %s338 = scalar_lea.vmem %s214, 16 [#allocation2]
        %339 = vst [vmem:[%s338] sm:$0xff] %v336
        %340 = vst [vmem:[%s338 + $0x8] sm:$0xff] %v337
        %s341 = scalar_lea.vmem %s233, 3
        %v342 = vld [vmem:[%s341] ss:$8 sm:$0x3]
        %v344 = vlaneseq
        %v345 = vshrl.u32 %v344, 7
        %v346 = vsub.s32 0, %v345
        %v347 = vrot.slane %v342, %v346
        %v348 = vlaneseq
        %v349 = vshrl.u32 %v348, 7
        %v350 = vsub.s32 1, %v349
        %v351 = vrot.slane %v342, %v350
        %v354 = vmul.f32 %v270, %v347
        %v355 = vmul.f32 %v270, %v351
        %v356 = vadd.f32 %v237, %v354
        %v357 = vadd.f32 %v238, %v355
        %v358 = vsub.f32 %v263, %v347
        %v359 = vsub.f32 %v264, %v351
        %v360 = vlaneseq
        %v361 = vshrl.u32 %v360, 7
        %v362 = vsub.s32 4, %v361
        %v363 = vrot.slane %v358, %v362
        %v364 = vlaneseq
        %v365 = vshrl.u32 %v364, 7
        %v366 = vsub.s32 4, %v365
        %v367 = vrot.slane %v359, %v366
        %v368 = vmul.f32 %v291, %v363
        %v369 = vmul.f32 %v291, %v367
        %v370 = vadd.f32 %v356, %v368
        %v371 = vadd.f32 %v357, %v369
        %s372 = scalar_lea.vmem %s214, 32 [#allocation2]
        %373 = vst [vmem:[%s372] sm:$0xff] %v370
        %374 = vst [vmem:[%s372 + $0x8] sm:$0xff] %v371
        %s375 = sand.u32 %s116, 1
        %s376 = scalar_lea.sflag [#allocation3], %s375
        %s377 = sand.u32 %s116, 1
        %s378 = smul.addr %s377, 48
        %s379 = scalar_lea.vmem [#allocation2], %s378
        // Predicated region
        $region33: #{tpu_custom_call.1} parent=31 // pred_check
          %p380 = pneg %p126
        $region34: #{tpu_custom_call.1} parent=31 // pred_check_branch
          %382 = sbr.rel (%p380) target = $region36
        $region35: #{tpu_custom_call.1} parent=31 // pred_region
          %s383 = smul.u32 3, %s21
          %s384 = smul.u32 2, %s22
          %s386 = ssub.s32 768, 768
          %387 = vsyncadd %s376, %s386
          %s388 = smul.addr %s383, 2
          %s389 = sadd.s32 %s384, %s388
          %s390 = smul.addr %s389, 128
          %s391 = scalar_lea.hbm %s3, %s390
          %s392 = sshll.u32 %s379, 4
          %s393 = int_to_ptr.vmem [resolvable:$true] %s392
          %398 = dma.vmem_to_hbm [thread:$0]  %s393, 768, %s391, %s376, 256, 256, 16
        $region36: #{tpu_custom_call.1} parent=31 // pred_fallthru
          _
      $region32: #{tpu_custom_call.1} parent=5 // pred_fallthru
        _
      %p399 = scmp.le.s32.totalorder 2, %s12
      // Predicated region
      $region37: #{tpu_custom_call.1} parent=5 // pred_check
        %p400 = pneg %p399
      $region38: #{tpu_custom_call.1} parent=5 // pred_check_branch
        %402 = sbr.rel (%p400) target = $region40
      $region39: #{tpu_custom_call.1} parent=5 // pred_region
        %s403 = ssub.s32 %s12, 2
        // Predicated region
        $region41: #{tpu_custom_call.1} parent=39 // pred_check
          %p404 = pneg %p132
        $region42: #{tpu_custom_call.1} parent=39 // pred_check_branch
          %406 = sbr.rel (%p404) target = $region44
        $region43: #{tpu_custom_call.1} parent=39 // pred_region
          %s407 = sand.u32 %s117, 1
          %s408 = scalar_lea.sflag [#allocation3], %s407
          %s409 = sand.u32 %s117, 1
          %s410 = smul.addr %s409, 48
          %s411 = scalar_lea.vmem [#allocation2], %s410
          %412 = dma.done %s408, 768
        $region44: #{tpu_custom_call.1} parent=39 // pred_fallthru
          _
      $region40: #{tpu_custom_call.1} parent=5 // pred_fallthru
        _
    $region6: #{tpu_custom_call.1} parent=1 // loop_footer
      %s16 = sadd.s32 1, %s12
    $region7: #{tpu_custom_call.1} parent=1 // loop_footer_branch
      %11 = sbr.rel target = $region3
    $region8: #{tpu_custom_call.1} parent=1 // loop_exit
      _
    %413 = vsyncpa [#allocation3], 1
    %s414 = scalar_lea.sflag [#allocation3], 1
    %415 = vsyncpa %s414, 1

</llo_original>
